<compile_context>
chip_gen: v5e
topology: v5e:2x2
jax: 0.10.0
libtpu: 0.0.40
codegen_flags: <defaults>
</compile_context>

<pallas_src>
import functools

import jax
import jax.numpy as jnp
from jax.experimental import pallas as pl
from jax.experimental.pallas import tpu as pltpu

WINDOW_SIZE = 11
SIGMA = 1.5
C1 = 0.01 ** 2
C2 = 0.03 ** 2

# Flip to jnp.bfloat16 for higher MXU throughput (validate SSIM tolerance first).
MATMUL_DTYPE = jnp.float32


def _gaussian_window(window_size: int, sigma: float) -> jnp.ndarray:
    x = jnp.arange(window_size, dtype=jnp.float32)
    g = jnp.exp(-((x - window_size // 2) ** 2) / (2.0 * sigma ** 2))
    return g / jnp.sum(g)


def _band_matrix(n: int, g: jnp.ndarray, window_size: int) -> jnp.ndarray:
    """Banded (symmetric) matrix M with (M @ z) == 1-D zero-padded 'same' conv of z
    along its leading axis with the normalized Gaussian taps g."""
    half = window_size // 2
    idx = jnp.arange(n)
    d = idx[None, :] - idx[:, None] + half          # tap index for (row i, col m)
    valid = (d >= 0) & (d <= window_size - 1)
    taps = g[jnp.clip(d, 0, window_size - 1)]
    return jnp.where(valid, taps, 0.0).astype(jnp.float32)


def _ssim_partial_kernel(a_ref, c_ref, x_ref, y_ref, out_ref, *, bt: int, h: int, w: int):
    """Writes the SSIM-map sum over this batch block into a lane-dense (8,128) slab."""
    A = a_ref[...]                                   # (H, H), symmetric
    Cm = c_ref[...]                                  # (W, W), symmetric
    x = x_ref[...].astype(jnp.float32)               # (BT, H, W)
    y = y_ref[...].astype(jnp.float32)               # (BT, H, W)

    # Stack the 5 conv operands for all BT images: (5*BT, H, W) -> (5*BT*H, W).
    ops = jnp.concatenate([x, y, x * x, y * y, x * y], axis=0)
    ops2 = ops.reshape(5 * bt * h, w)

    # Column conv (along W): ONE big matmul, M = 5*BT*H.
    u = jnp.dot(ops2.astype(MATMUL_DTYPE), Cm.astype(MATMUL_DTYPE),
                preferred_element_type=jnp.float32)              # (5*BT*H, W)

    # Row conv (along H): single H<->W transpose, then ONE big matmul (A symmetric).
    ut = jnp.swapaxes(u.reshape(5 * bt, h, w), 1, 2).reshape(5 * bt * w, h)
    v = jnp.dot(ut.astype(MATMUL_DTYPE), A.astype(MATMUL_DTYPE),
                preferred_element_type=jnp.float32)              # (5*BT*W, H)

    # Unstack conv results (they live in the transposed (W, H) layout — fine,
    # everything below is elementwise + a global sum).
    n = bt * w
    mu1 = v[0 * n:1 * n]
    mu2 = v[1 * n:2 * n]
    ex2 = v[2 * n:3 * n]
    ey2 = v[3 * n:4 * n]
    exy = v[4 * n:5 * n]

    mu1_sq = mu1 * mu1
    mu2_sq = mu2 * mu2
    mu1_mu2 = mu1 * mu2
    sigma1_sq = ex2 - mu1_sq
    sigma2_sq = ey2 - mu2_sq
    sigma12 = exy - mu1_mu2

    num = (2.0 * mu1_mu2 + C1) * (2.0 * sigma12 + C2)
    den = (mu1_sq + mu2_sq + C1) * (sigma1_sq + sigma2_sq + C2)
    ssim_map = num * pl.reciprocal(den, approx=False)

    partial = jnp.sum(ssim_map)
    out_ref[...] = jnp.full((8, 128), partial, dtype=jnp.float32)


def _pick_block_batch(batch: int, h: int, w: int) -> int:
    # ~30 live f32 (BT, H, W) slabs during the fused compute; keep them <= ~6 MiB
    # so we stay well inside the scoped VMEM limit on all generations.
    budget = 6 * 1024 * 1024
    bt = budget // (30 * h * w * 4)
    return int(max(1, min(batch, bt)))


def sim_loss(pred: jnp.ndarray, label: jnp.ndarray, weight: float = 1.0) -> jnp.ndarray:
    """Pallas implementation of SimLoss(mode='ssim', weight=weight)(pred, label).

    pred, label: (B, 1, H, W) float arrays (NCHW, single channel).
    Returns a scalar float32 loss: (1 - mean_SSIM) * weight.
    """
    B, ch, H, W = pred.shape
    assert ch == 1, "SSIM configured with n_channels=1"

    x = pred.reshape(B, H, W).astype(jnp.float32)
    y = label.reshape(B, H, W).astype(jnp.float32)

    bt = _pick_block_batch(B, H, W)
    num_blocks = pl.cdiv(B, bt)
    pad_b = num_blocks * bt - B
    if pad_b:
        # Zero-padded images give SSIM == 1 at every pixel (exact); corrected below.
        x = jnp.pad(x, ((0, pad_b), (0, 0), (0, 0)))
        y = jnp.pad(y, ((0, pad_b), (0, 0), (0, 0)))

    g = _gaussian_window(WINDOW_SIZE, SIGMA)
    A = _band_matrix(H, g, WINDOW_SIZE)
    Cm = _band_matrix(W, g, WINDOW_SIZE)

    kernel = functools.partial(_ssim_partial_kernel, bt=bt, h=H, w=W)

    partials = pl.pallas_call(
        kernel,
        out_shape=jax.ShapeDtypeStruct((num_blocks * 8, 128), jnp.float32),
        grid_spec=pltpu.PrefetchScalarGridSpec(
            num_scalar_prefetch=0,
            grid=(num_blocks,),
            in_specs=[
                pl.BlockSpec((H, H), lambda i: (0, 0)),          # row-conv band matrix
                pl.BlockSpec((W, W), lambda i: (0, 0)),          # col-conv band matrix
                pl.BlockSpec((bt, H, W), lambda i: (i, 0, 0)),   # pred block
                pl.BlockSpec((bt, H, W), lambda i: (i, 0, 0)),   # label block
            ],
            out_specs=pl.BlockSpec((8, 128), lambda i: (i, 0)),  # per-block partial sum
        ),
        compiler_params=pltpu.CompilerParams(
            dimension_semantics=("parallel",),           # disjoint outputs -> megacore OK
            vmem_limit_bytes=48 * 1024 * 1024,
        ),
    )(A, Cm, x, y)

    # Final reduction + loss in the wrapper (per-block partials keep f32 precision).
    block_sums = partials.reshape(num_blocks, 8, 128)[:, 0, 0]
    total = jnp.sum(block_sums)
    total = total - float(pad_b * H * W)                 # remove exact padded contribution
    mean_ssim = total / float(B * H * W)
    return ((1.0 - mean_ssim) * weight).astype(jnp.float32)


if __name__ == "__main__":
    key = jax.random.PRNGKey(0)
    k1, k2 = jax.random.split(key)
    B, C, H, W = 2, 1, 16, 16
    pred = jax.random.uniform(k1, (B, C, H, W), dtype=jnp.float32)
    label = jax.random.uniform(k2, (B, C, H, W), dtype=jnp.float32)

    loss = jax.jit(sim_loss)(pred, label)
    jax.block_until_ready(loss)
    print("KERNEL_OK")
</pallas_src>

<mosaic_0001>
module attributes {stable_mosaic.version = 11 : i64} {
  func.func @_ssim_partial_kernel(%arg0: i32, %arg1: memref<16x16xf32, #tpu.memory_space<vmem>>, %arg2: memref<16x16xf32, #tpu.memory_space<vmem>>, %arg3: memref<2x16x16xf32, #tpu.memory_space<vmem>>, %arg4: memref<2x16x16xf32, #tpu.memory_space<vmem>>, %arg5: memref<8x128xf32, #tpu.memory_space<vmem>>) attributes {dimension_semantics = [#tpu.dimension_semantics<parallel>], iteration_bounds = array<i64: 1>, scalar_prefetch = 0 : i64, scratch_operands = 0 : i64, tpu.core_type = #tpu.core_type<tc>, window_params = [{pipeline_mode = #tpu.pipeline_mode<synchronous>, transform_indices = @transform_0, window_bounds = array<i64: 16, 16>}, {pipeline_mode = #tpu.pipeline_mode<synchronous>, transform_indices = @transform_1, window_bounds = array<i64: 16, 16>}, {transform_indices = @transform_2, window_bounds = array<i64: 2, 16, 16>}, {transform_indices = @transform_3, window_bounds = array<i64: 2, 16, 16>}, {transform_indices = @transform_4, window_bounds = array<i64: 8, 128>}]} {
    %c0 = arith.constant 0 : index
    %c0_0 = arith.constant 0 : index
    %0 = vector.load %arg1[%c0, %c0_0] : memref<16x16xf32, #tpu.memory_space<vmem>>, vector<16x16xf32>
    %c0_1 = arith.constant 0 : index
    %c0_2 = arith.constant 0 : index
    %1 = vector.load %arg2[%c0_1, %c0_2] : memref<16x16xf32, #tpu.memory_space<vmem>>, vector<16x16xf32>
    %c0_3 = arith.constant 0 : index
    %c0_4 = arith.constant 0 : index
    %c0_5 = arith.constant 0 : index
    %2 = vector.load %arg3[%c0_3, %c0_4, %c0_5] : memref<2x16x16xf32, #tpu.memory_space<vmem>>, vector<2x16x16xf32>
    %c0_6 = arith.constant 0 : index
    %c0_7 = arith.constant 0 : index
    %c0_8 = arith.constant 0 : index
    %3 = vector.load %arg4[%c0_6, %c0_7, %c0_8] : memref<2x16x16xf32, #tpu.memory_space<vmem>>, vector<2x16x16xf32>
    %4 = arith.mulf %2, %2 : vector<2x16x16xf32>
    %5 = arith.mulf %3, %3 : vector<2x16x16xf32>
    %6 = arith.mulf %2, %3 : vector<2x16x16xf32>
    %7 = tpu.concatenate %2, %3, %4, %5, %6 in 0 : vector<2x16x16xf32>, vector<2x16x16xf32>, vector<2x16x16xf32>, vector<2x16x16xf32>, vector<2x16x16xf32> -> vector<10x16x16xf32>
    %8 = vector.shape_cast %7 : vector<10x16x16xf32> to vector<160x16xf32>
    %cst = arith.constant dense<0.000000e+00> : vector<160x16xf32>
    %9 = tpu.matmul %8, %1, %cst {dimension_numbers = #tpu.dot_dimension_numbers<[1], [0], [0], [1], [0, 0, 1, 1], [], []>} : vector<160x16xf32>, vector<16x16xf32>, vector<160x16xf32> -> vector<160x16xf32>
    %10 = vector.shape_cast %9 : vector<160x16xf32> to vector<10x16x16xf32>
    %11 = tpu.transpose %10, [0, 2, 1] : vector<10x16x16xf32> -> vector<10x16x16xf32>
    %12 = vector.shape_cast %11 : vector<10x16x16xf32> to vector<160x16xf32>
    %cst_9 = arith.constant dense<0.000000e+00> : vector<160x16xf32>
    %13 = tpu.matmul %12, %0, %cst_9 {dimension_numbers = #tpu.dot_dimension_numbers<[1], [0], [0], [1], [0, 0, 1, 1], [], []>} : vector<160x16xf32>, vector<16x16xf32>, vector<160x16xf32> -> vector<160x16xf32>
    %14 = vector.extract_strided_slice %13 {offsets = [0, 0], sizes = [32, 16], strides = [1, 1]} : vector<160x16xf32> to vector<32x16xf32>
    %15 = vector.extract_strided_slice %13 {offsets = [32, 0], sizes = [32, 16], strides = [1, 1]} : vector<160x16xf32> to vector<32x16xf32>
    %16 = vector.extract_strided_slice %13 {offsets = [64, 0], sizes = [32, 16], strides = [1, 1]} : vector<160x16xf32> to vector<32x16xf32>
    %17 = vector.extract_strided_slice %13 {offsets = [96, 0], sizes = [32, 16], strides = [1, 1]} : vector<160x16xf32> to vector<32x16xf32>
    %18 = vector.extract_strided_slice %13 {offsets = [128, 0], sizes = [32, 16], strides = [1, 1]} : vector<160x16xf32> to vector<32x16xf32>
    %19 = arith.mulf %14, %14 : vector<32x16xf32>
    %20 = arith.mulf %15, %15 : vector<32x16xf32>
    %21 = arith.mulf %14, %15 : vector<32x16xf32>
    %22 = arith.subf %16, %19 : vector<32x16xf32>
    %23 = arith.subf %17, %20 : vector<32x16xf32>
    %24 = arith.subf %18, %21 : vector<32x16xf32>
    %cst_10 = arith.constant 2.000000e+00 : f32
    %25 = vector.broadcast %cst_10 : f32 to vector<32x16xf32>
    %26 = arith.mulf %25, %21 : vector<32x16xf32>
    %cst_11 = arith.constant 9.99999974E-5 : f32
    %27 = vector.broadcast %cst_11 : f32 to vector<32x16xf32>
    %28 = arith.addf %26, %27 : vector<32x16xf32>
    %cst_12 = arith.constant 2.000000e+00 : f32
    %29 = vector.broadcast %cst_12 : f32 to vector<32x16xf32>
    %30 = arith.mulf %29, %24 : vector<32x16xf32>
    %cst_13 = arith.constant 8.99999984E-4 : f32
    %31 = vector.broadcast %cst_13 : f32 to vector<32x16xf32>
    %32 = arith.addf %30, %31 : vector<32x16xf32>
    %33 = arith.mulf %28, %32 : vector<32x16xf32>
    %34 = arith.addf %19, %20 : vector<32x16xf32>
    %cst_14 = arith.constant 9.99999974E-5 : f32
    %35 = vector.broadcast %cst_14 : f32 to vector<32x16xf32>
    %36 = arith.addf %34, %35 : vector<32x16xf32>
    %37 = arith.addf %22, %23 : vector<32x16xf32>
    %cst_15 = arith.constant 8.99999984E-4 : f32
    %38 = vector.broadcast %cst_15 : f32 to vector<32x16xf32>
    %39 = arith.addf %37, %38 : vector<32x16xf32>
    %40 = arith.mulf %36, %39 : vector<32x16xf32>
    %41 = tpu.reciprocal %40 : vector<32x16xf32> -> vector<32x16xf32>
    %42 = arith.mulf %33, %41 : vector<32x16xf32>
    %43 = vector.shape_cast %42 : vector<32x16xf32> to vector<1x32x16xf32>
    %cst_16 = arith.constant dense<0.000000e+00> : vector<1xf32>
    %44 = vector.multi_reduction <add>, %43, %cst_16 [1, 2] : vector<1x32x16xf32> to vector<1xf32>
    %45 = vector.shape_cast %44 : vector<1xf32> to vector<1x1x1xf32>
    %46 = vector.extract %45[0, 0, 0] : f32 from vector<1x1x1xf32>
    %47 = vector.broadcast %46 : f32 to vector<8x128xf32>
    %c0_17 = arith.constant 0 : index
    %c0_18 = arith.constant 0 : index
    %48 = vector.load %arg5[%c0_17, %c0_18] : memref<8x128xf32, #tpu.memory_space<vmem>>, vector<8x128xf32>
    tpu.vector_store %arg5[%c0_17, %c0_18], %47 {strides = array<i32>} : memref<8x128xf32, #tpu.memory_space<vmem>>, vector<8x128xf32>,
    return
  }
  func.func @transform_0(%arg0: i32) -> (i32, i32) {
    %c0_i32 = arith.constant 0 : i32
    %c0_i32_0 = arith.constant 0 : i32
    %c0_i32_1 = arith.constant 0 : i32
    return %c0_i32, %c0_i32_0 : i32, i32
  }
  func.func @transform_1(%arg0: i32) -> (i32, i32) {
    %c0_i32 = arith.constant 0 : i32
    %c0_i32_0 = arith.constant 0 : i32
    %c0_i32_1 = arith.constant 0 : i32
    return %c0_i32, %c0_i32_0 : i32, i32
  }
  func.func @transform_2(%arg0: i32) -> (i32, i32, i32) {
    %c0_i32 = arith.constant 0 : i32
    %c0_i32_0 = arith.constant 0 : i32
    %c0_i32_1 = arith.constant 0 : i32
    return %arg0, %c0_i32, %c0_i32_0 : i32, i32, i32
  }
  func.func @transform_3(%arg0: i32) -> (i32, i32, i32) {
    %c0_i32 = arith.constant 0 : i32
    %c0_i32_0 = arith.constant 0 : i32
    %c0_i32_1 = arith.constant 0 : i32
    return %arg0, %c0_i32, %c0_i32_0 : i32, i32, i32
  }
  func.func @transform_4(%arg0: i32) -> (i32, i32) {
    %c0_i32 = arith.constant 0 : i32
    %c0_i32_0 = arith.constant 0 : i32
    return %arg0, %c0_i32 : i32, i32
  }
}

</mosaic_0001>

<llo_original>
// kernel: sim_loss.1
$region0: #{sim_loss.1}
  #allocation0 [shape = 'u32[]', space=smem, size = 0x4, offset = 0x4, fixed_abs, tag = 'smem constant byte address 0x4 - core index']
  #allocation1 [shape = 'u32[72,128]{1,0:T(1,128)}', space=vmem, size = 0x9000, scoped, tag = 'internal scratch']
  %s0 = inlined_call_operand.vmem [shape: f32[16,16], index: 0, kind: input, shape index: {}, may-alias: {0,1}]
  %s1 = inlined_call_operand.vmem [shape: f32[16,16], index: 1, kind: input, shape index: {}, may-alias: {0,1}]
  %s2 = inlined_call_operand.vmem [shape: f32[2,16,16], index: 2, kind: input, shape index: {}]
  %s3 = inlined_call_operand.vmem [shape: f32[2,16,16], index: 3, kind: input, shape index: {}]
  %s4 = inlined_call_operand.vmem [shape: f32[8,128], index: 4, kind: output, shape index: {}]
  %s5 = sld [smem:[#allocation0]]
  $region26: #{sim_loss.1} parent=0
    _
  %s7 = ssub.s32 1, %s5
  %s8 = scalar_select 0, %s7, %s5
  // Predicated region
  $region2: #{sim_loss.1} parent=0 // pred_check
    _
  $region3: #{sim_loss.1} parent=0 // pred_check_branch
    %10 = sbr.rel (0) target = $region5
  $region4: #{sim_loss.1} parent=0 // pred_region
    _
  $region5: #{sim_loss.1} parent=0 // pred_fallthru
    _
  // Predicated region
  $region6: #{sim_loss.1} parent=0 // pred_check
    _
  $region7: #{sim_loss.1} parent=0 // pred_check_branch
    %12 = sbr.rel (0) target = $region9
  $region8: #{sim_loss.1} parent=0 // pred_region
    _
  $region9: #{sim_loss.1} parent=0 // pred_fallthru
    _
  // Predicated region
  $region10: #{sim_loss.1} parent=0 // pred_check
    _
  $region11: #{sim_loss.1} parent=0 // pred_check_branch
    %14 = sbr.rel (0) target = $region13
  $region12: #{sim_loss.1} parent=0 // pred_region
    _
  $region13: #{sim_loss.1} parent=0 // pred_fallthru
    _
  // Predicated region
  $region14: #{sim_loss.1} parent=0 // pred_check
    _
  $region15: #{sim_loss.1} parent=0 // pred_check_branch
    %16 = sbr.rel (0) target = $region17
  $region16: #{sim_loss.1} parent=0 // pred_region
    _
  $region17: #{sim_loss.1} parent=0 // pred_fallthru
    _
  %v17 = vld [vmem:[%s0] sm:$0xff]
  %v18 = vld [vmem:[%s0 + $0x8] sm:$0xff]
  %v19 = vld [vmem:[%s1] sm:$0xff]
  %v20 = vld [vmem:[%s1 + $0x8] sm:$0xff]
  %v21 = vld [vmem:[%s2] sm:$0xff]
  %v22 = vld [vmem:[%s2 + $0x8] sm:$0xff]
  %v23 = vld [vmem:[%s2 + $0x10] sm:$0xff]
  %v24 = vld [vmem:[%s2 + $0x18] sm:$0xff]
  %v25 = vld [vmem:[%s3] sm:$0xff]
  %v26 = vld [vmem:[%s3 + $0x8] sm:$0xff]
  %v27 = vld [vmem:[%s3 + $0x10] sm:$0xff]
  %v28 = vld [vmem:[%s3 + $0x18] sm:$0xff]
  %v29 = vmul.f32 %v21, %v21
  %v30 = vmul.f32 %v22, %v22
  %v31 = vmul.f32 %v23, %v23
  %v32 = vmul.f32 %v24, %v24
  %v33 = vmul.f32 %v25, %v25
  %v34 = vmul.f32 %v26, %v26
  %v35 = vmul.f32 %v27, %v27
  %v36 = vmul.f32 %v28, %v28
  %v37 = vmul.f32 %v21, %v25
  %v38 = vmul.f32 %v22, %v26
  %v39 = vmul.f32 %v23, %v27
  %v40 = vmul.f32 %v24, %v28
  %vm41 = vcmask 130048
  %v43 = vsel %vm41, %v21, 0
  %v46 = vsel %vm41, %v22, 0
  %v49 = vsel %vm41, %v23, 0
  %v52 = vsel %vm41, %v24, 0
  %v55 = vsel %vm41, %v25, 0
  %v58 = vsel %vm41, %v26, 0
  %v61 = vsel %vm41, %v27, 0
  %v64 = vsel %vm41, %v28, 0
  %v67 = vsel %vm41, %v29, 0
  %v70 = vsel %vm41, %v30, 0
  %v73 = vsel %vm41, %v31, 0
  %v76 = vsel %vm41, %v32, 0
  %v79 = vsel %vm41, %v33, 0
  %v82 = vsel %vm41, %v34, 0
  %v85 = vsel %vm41, %v35, 0
  %v88 = vsel %vm41, %v36, 0
  %v91 = vsel %vm41, %v37, 0
  %v94 = vsel %vm41, %v38, 0
  %v97 = vsel %vm41, %v39, 0
  %v100 = vsel %vm41, %v40, 0
  %102 = vmatpush.msra.mxu0 0.0
  %103 = vmatpush.msra.mxu0 0.0
  %104 = vmatpush.msra.mxu0 0.0
  %105 = vmatpush.msra.mxu0 0.0
  %106 = vmatpush.msra.mxu0 0.0
  %107 = vmatpush.msra.mxu0 0.0
  %108 = vmatpush.msra.mxu0 0.0
  %109 = vmatpush.msra.mxu0 0.0
  %110 = vmatpush.msra.mxu0 0.0
  %111 = vmatpush.msra.mxu0 0.0
  %112 = vmatpush.msra.mxu0 0.0
  %113 = vmatpush.msra.mxu0 0.0
  %114 = vmatpush.msra.mxu0 0.0
  %115 = vmatpush.msra.mxu0 0.0
  %116 = vmatpush.msra.mxu0 %v20
  %117 = vmatpush.msra.mxu0 %v19
  %118 = vmatmul.f32.gmra.mxu0 %v43
  %v119 = vpop.f32.mrf.mxu0
  %v120 = vadd.f32 0.0, %v119
  %121 = vmatmul.f32.gmra.mxu0 %v46
  %v122 = vpop.f32.mrf.mxu0
  %v123 = vadd.f32 0.0, %v122
  %124 = vmatmul.f32.gmra.mxu0 %v49
  %v125 = vpop.f32.mrf.mxu0
  %v126 = vadd.f32 0.0, %v125
  %127 = vmatmul.f32.gmra.mxu0 %v52
  %v128 = vpop.f32.mrf.mxu0
  %v129 = vadd.f32 0.0, %v128
  %130 = vmatmul.f32.gmra.mxu0 %v55
  %v131 = vpop.f32.mrf.mxu0
  %v132 = vadd.f32 0.0, %v131
  %133 = vmatmul.f32.gmra.mxu0 %v58
  %v134 = vpop.f32.mrf.mxu0
  %v135 = vadd.f32 0.0, %v134
  %136 = vmatmul.f32.gmra.mxu0 %v61
  %v137 = vpop.f32.mrf.mxu0
  %v138 = vadd.f32 0.0, %v137
  %139 = vmatmul.f32.gmra.mxu0 %v64
  %v140 = vpop.f32.mrf.mxu0
  %v141 = vadd.f32 0.0, %v140
  %142 = vmatmul.f32.gmra.mxu0 %v67
  %v143 = vpop.f32.mrf.mxu0
  %v144 = vadd.f32 0.0, %v143
  %145 = vmatmul.f32.gmra.mxu0 %v70
  %v146 = vpop.f32.mrf.mxu0
  %v147 = vadd.f32 0.0, %v146
  %148 = vmatmul.f32.gmra.mxu0 %v73
  %v149 = vpop.f32.mrf.mxu0
  %v150 = vadd.f32 0.0, %v149
  %151 = vmatmul.f32.gmra.mxu0 %v76
  %v152 = vpop.f32.mrf.mxu0
  %v153 = vadd.f32 0.0, %v152
  %154 = vmatmul.f32.gmra.mxu0 %v79
  %v155 = vpop.f32.mrf.mxu0
  %v156 = vadd.f32 0.0, %v155
  %157 = vmatmul.f32.gmra.mxu0 %v82
  %v158 = vpop.f32.mrf.mxu0
  %v159 = vadd.f32 0.0, %v158
  %160 = vmatmul.f32.gmra.mxu0 %v85
  %v161 = vpop.f32.mrf.mxu0
  %v162 = vadd.f32 0.0, %v161
  %163 = vmatmul.f32.gmra.mxu0 %v88
  %v164 = vpop.f32.mrf.mxu0
  %v165 = vadd.f32 0.0, %v164
  %166 = vmatmul.f32.gmra.mxu0 %v91
  %v167 = vpop.f32.mrf.mxu0
  %v168 = vadd.f32 0.0, %v167
  %169 = vmatmul.f32.gmra.mxu0 %v94
  %v170 = vpop.f32.mrf.mxu0
  %v171 = vadd.f32 0.0, %v170
  %172 = vmatmul.f32.gmra.mxu0 %v97
  %v173 = vpop.f32.mrf.mxu0
  %v174 = vadd.f32 0.0, %v173
  %175 = vmatmul.f32.gmra.mxu0 %v100
  %v176 = vpop.f32.mrf.mxu0
  %v177 = vadd.f32 0.0, %v176
  %178 = vdwg.mxu0
  %179 = vxpose.xlu0.b32.start [1/16] %v120, 128
  %180 = vxpose.xlu0.b32.cont [2/16] %v123, 128
  %181 = vxpose.xlu0.b32.cont [3/16] 0.0, 128
  %182 = vxpose.xlu0.b32.cont [4/16] 0.0, 128
  %183 = vxpose.xlu0.b32.cont [5/16] 0.0, 128
  %184 = vxpose.xlu0.b32.cont [6/16] 0.0, 128
  %185 = vxpose.xlu0.b32.cont [7/16] 0.0, 128
  %186 = vxpose.xlu0.b32.cont [8/16] 0.0, 128
  %187 = vxpose.xlu0.b32.cont [9/16] 0.0, 128
  %188 = vxpose.xlu0.b32.cont [10/16] 0.0, 128
  %189 = vxpose.xlu0.b32.cont [11/16] 0.0, 128
  %190 = vxpose.xlu0.b32.cont [12/16] 0.0, 128
  %191 = vxpose.xlu0.b32.cont [13/16] 0.0, 128
  %192 = vxpose.xlu0.b32.cont [14/16] 0.0, 128
  %193 = vxpose.xlu0.b32.cont [15/16] 0.0, 128
  %194 = vxpose.xlu0.b32.end [16/16] 0.0, 128
  %v195 = vpop.trf.xlu0
  %v196 = vpop.trf.xlu0
  %v197 = vpop.trf.xlu0
  %v198 = vpop.trf.xlu0
  %v199 = vpop.trf.xlu0
  %v200 = vpop.trf.xlu0
  %v201 = vpop.trf.xlu0
  %v202 = vpop.trf.xlu0
  %v203 = vpop.trf.xlu0
  %v204 = vpop.trf.xlu0
  %v205 = vpop.trf.xlu0
  %v206 = vpop.trf.xlu0
  %v207 = vpop.trf.xlu0
  %v208 = vpop.trf.xlu0
  %v209 = vpop.trf.xlu0
  %v210 = vpop.trf.xlu0
  %211 = vxpose.xlu0.b32.start [1/16] %v126, 128
  %212 = vxpose.xlu0.b32.cont [2/16] %v129, 128
  %213 = vxpose.xlu0.b32.cont [3/16] 0.0, 128
  %214 = vxpose.xlu0.b32.cont [4/16] 0.0, 128
  %215 = vxpose.xlu0.b32.cont [5/16] 0.0, 128
  %216 = vxpose.xlu0.b32.cont [6/16] 0.0, 128
  %217 = vxpose.xlu0.b32.cont [7/16] 0.0, 128
  %218 = vxpose.xlu0.b32.cont [8/16] 0.0, 128
  %219 = vxpose.xlu0.b32.cont [9/16] 0.0, 128
  %220 = vxpose.xlu0.b32.cont [10/16] 0.0, 128
  %221 = vxpose.xlu0.b32.cont [11/16] 0.0, 128
  %222 = vxpose.xlu0.b32.cont [12/16] 0.0, 128
  %223 = vxpose.xlu0.b32.cont [13/16] 0.0, 128
  %224 = vxpose.xlu0.b32.cont [14/16] 0.0, 128
  %225 = vxpose.xlu0.b32.cont [15/16] 0.0, 128
  %226 = vxpose.xlu0.b32.end [16/16] 0.0, 128
  %v227 = vpop.trf.xlu0
  %v228 = vpop.trf.xlu0
  %v229 = vpop.trf.xlu0
  %v230 = vpop.trf.xlu0
  %v231 = vpop.trf.xlu0
  %v232 = vpop.trf.xlu0
  %v233 = vpop.trf.xlu0
  %v234 = vpop.trf.xlu0
  %v235 = vpop.trf.xlu0
  %v236 = vpop.trf.xlu0
  %v237 = vpop.trf.xlu0
  %v238 = vpop.trf.xlu0
  %v239 = vpop.trf.xlu0
  %v240 = vpop.trf.xlu0
  %v241 = vpop.trf.xlu0
  %v242 = vpop.trf.xlu0
  %243 = vxpose.xlu0.b32.start [1/16] %v132, 128
  %244 = vxpose.xlu0.b32.cont [2/16] %v135, 128
  %245 = vxpose.xlu0.b32.cont [3/16] 0.0, 128
  %246 = vxpose.xlu0.b32.cont [4/16] 0.0, 128
  %247 = vxpose.xlu0.b32.cont [5/16] 0.0, 128
  %248 = vxpose.xlu0.b32.cont [6/16] 0.0, 128
  %249 = vxpose.xlu0.b32.cont [7/16] 0.0, 128
  %250 = vxpose.xlu0.b32.cont [8/16] 0.0, 128
  %251 = vxpose.xlu0.b32.cont [9/16] 0.0, 128
  %252 = vxpose.xlu0.b32.cont [10/16] 0.0, 128
  %253 = vxpose.xlu0.b32.cont [11/16] 0.0, 128
  %254 = vxpose.xlu0.b32.cont [12/16] 0.0, 128
  %255 = vxpose.xlu0.b32.cont [13/16] 0.0, 128
  %256 = vxpose.xlu0.b32.cont [14/16] 0.0, 128
  %257 = vxpose.xlu0.b32.cont [15/16] 0.0, 128
  %258 = vxpose.xlu0.b32.end [16/16] 0.0, 128
  %v259 = vpop.trf.xlu0
  %v260 = vpop.trf.xlu0
  %v261 = vpop.trf.xlu0
  %v262 = vpop.trf.xlu0
  %v263 = vpop.trf.xlu0
  %v264 = vpop.trf.xlu0
  %v265 = vpop.trf.xlu0
  %v266 = vpop.trf.xlu0
  %v267 = vpop.trf.xlu0
  %v268 = vpop.trf.xlu0
  %v269 = vpop.trf.xlu0
  %v270 = vpop.trf.xlu0
  %v271 = vpop.trf.xlu0
  %v272 = vpop.trf.xlu0
  %v273 = vpop.trf.xlu0
  %v274 = vpop.trf.xlu0
  %275 = vxpose.xlu0.b32.start [1/16] %v138, 128
  %276 = vxpose.xlu0.b32.cont [2/16] %v141, 128
  %277 = vxpose.xlu0.b32.cont [3/16] 0.0, 128
  %278 = vxpose.xlu0.b32.cont [4/16] 0.0, 128
  %279 = vxpose.xlu0.b32.cont [5/16] 0.0, 128
  %280 = vxpose.xlu0.b32.cont [6/16] 0.0, 128
  %281 = vxpose.xlu0.b32.cont [7/16] 0.0, 128
  %282 = vxpose.xlu0.b32.cont [8/16] 0.0, 128
  %283 = vxpose.xlu0.b32.cont [9/16] 0.0, 128
  %284 = vxpose.xlu0.b32.cont [10/16] 0.0, 128
  %285 = vxpose.xlu0.b32.cont [11/16] 0.0, 128
  %286 = vxpose.xlu0.b32.cont [12/16] 0.0, 128
  %287 = vxpose.xlu0.b32.cont [13/16] 0.0, 128
  %288 = vxpose.xlu0.b32.cont [14/16] 0.0, 128
  %289 = vxpose.xlu0.b32.cont [15/16] 0.0, 128
  %290 = vxpose.xlu0.b32.end [16/16] 0.0, 128
  %v291 = vpop.trf.xlu0
  %v292 = vpop.trf.xlu0
  %v293 = vpop.trf.xlu0
  %v294 = vpop.trf.xlu0
  %v295 = vpop.trf.xlu0
  %v296 = vpop.trf.xlu0
  %v297 = vpop.trf.xlu0
  %v298 = vpop.trf.xlu0
  %v299 = vpop.trf.xlu0
  %v300 = vpop.trf.xlu0
  %v301 = vpop.trf.xlu0
  %v302 = vpop.trf.xlu0
  %v303 = vpop.trf.xlu0
  %v304 = vpop.trf.xlu0
  %v305 = vpop.trf.xlu0
  %v306 = vpop.trf.xlu0
  %307 = vxpose.xlu0.b32.start [1/16] %v144, 128
  %308 = vxpose.xlu0.b32.cont [2/16] %v147, 128
  %309 = vxpose.xlu0.b32.cont [3/16] 0.0, 128
  %310 = vxpose.xlu0.b32.cont [4/16] 0.0, 128
  %311 = vxpose.xlu0.b32.cont [5/16] 0.0, 128
  %312 = vxpose.xlu0.b32.cont [6/16] 0.0, 128
  %313 = vxpose.xlu0.b32.cont [7/16] 0.0, 128
  %314 = vxpose.xlu0.b32.cont [8/16] 0.0, 128
  %315 = vxpose.xlu0.b32.cont [9/16] 0.0, 128
  %316 = vxpose.xlu0.b32.cont [10/16] 0.0, 128
  %317 = vxpose.xlu0.b32.cont [11/16] 0.0, 128
  %318 = vxpose.xlu0.b32.cont [12/16] 0.0, 128
  %319 = vxpose.xlu0.b32.cont [13/16] 0.0, 128
  %320 = vxpose.xlu0.b32.cont [14/16] 0.0, 128
  %321 = vxpose.xlu0.b32.cont [15/16] 0.0, 128
  %322 = vxpose.xlu0.b32.end [16/16] 0.0, 128
  %v323 = vpop.trf.xlu0
  %v324 = vpop.trf.xlu0
  %v325 = vpop.trf.xlu0
  %v326 = vpop.trf.xlu0
  %v327 = vpop.trf.xlu0
  %v328 = vpop.trf.xlu0
  %v329 = vpop.trf.xlu0
  %v330 = vpop.trf.xlu0
  %v331 = vpop.trf.xlu0
  %v332 = vpop.trf.xlu0
  %v333 = vpop.trf.xlu0
  %v334 = vpop.trf.xlu0
  %v335 = vpop.trf.xlu0
  %v336 = vpop.trf.xlu0
  %v337 = vpop.trf.xlu0
  %v338 = vpop.trf.xlu0
  %339 = vxpose.xlu0.b32.start [1/16] %v150, 128
  %340 = vxpose.xlu0.b32.cont [2/16] %v153, 128
  %341 = vxpose.xlu0.b32.cont [3/16] 0.0, 128
  %342 = vxpose.xlu0.b32.cont [4/16] 0.0, 128
  %343 = vxpose.xlu0.b32.cont [5/16] 0.0, 128
  %344 = vxpose.xlu0.b32.cont [6/16] 0.0, 128
  %345 = vxpose.xlu0.b32.cont [7/16] 0.0, 128
  %346 = vxpose.xlu0.b32.cont [8/16] 0.0, 128
  %347 = vxpose.xlu0.b32.cont [9/16] 0.0, 128
  %348 = vxpose.xlu0.b32.cont [10/16] 0.0, 128
  %349 = vxpose.xlu0.b32.cont [11/16] 0.0, 128
  %350 = vxpose.xlu0.b32.cont [12/16] 0.0, 128
  %351 = vxpose.xlu0.b32.cont [13/16] 0.0, 128
  %352 = vxpose.xlu0.b32.cont [14/16] 0.0, 128
  %353 = vxpose.xlu0.b32.cont [15/16] 0.0, 128
  %354 = vxpose.xlu0.b32.end [16/16] 0.0, 128
  %v355 = vpop.trf.xlu0
  %v356 = vpop.trf.xlu0
  %v357 = vpop.trf.xlu0
  %v358 = vpop.trf.xlu0
  %v359 = vpop.trf.xlu0
  %v360 = vpop.trf.xlu0
  %v361 = vpop.trf.xlu0
  %v362 = vpop.trf.xlu0
  %v363 = vpop.trf.xlu0
  %v364 = vpop.trf.xlu0
  %v365 = vpop.trf.xlu0
  %v366 = vpop.trf.xlu0
  %v367 = vpop.trf.xlu0
  %v368 = vpop.trf.xlu0
  %v369 = vpop.trf.xlu0
  %v370 = vpop.trf.xlu0
  %371 = vxpose.xlu0.b32.start [1/16] %v156, 128
  %372 = vxpose.xlu0.b32.cont [2/16] %v159, 128
  %373 = vxpose.xlu0.b32.cont [3/16] 0.0, 128
  %374 = vxpose.xlu0.b32.cont [4/16] 0.0, 128
  %375 = vxpose.xlu0.b32.cont [5/16] 0.0, 128
  %376 = vxpose.xlu0.b32.cont [6/16] 0.0, 128
  %377 = vxpose.xlu0.b32.cont [7/16] 0.0, 128
  %378 = vxpose.xlu0.b32.cont [8/16] 0.0, 128
  %379 = vxpose.xlu0.b32.cont [9/16] 0.0, 128
  %380 = vxpose.xlu0.b32.cont [10/16] 0.0, 128
  %381 = vxpose.xlu0.b32.cont [11/16] 0.0, 128
  %382 = vxpose.xlu0.b32.cont [12/16] 0.0, 128
  %383 = vxpose.xlu0.b32.cont [13/16] 0.0, 128
  %384 = vxpose.xlu0.b32.cont [14/16] 0.0, 128
  %385 = vxpose.xlu0.b32.cont [15/16] 0.0, 128
  %386 = vxpose.xlu0.b32.end [16/16] 0.0, 128
  %v387 = vpop.trf.xlu0
  %v388 = vpop.trf.xlu0
  %v389 = vpop.trf.xlu0
  %v390 = vpop.trf.xlu0
  %v391 = vpop.trf.xlu0
  %v392 = vpop.trf.xlu0
  %v393 = vpop.trf.xlu0
  %v394 = vpop.trf.xlu0
  %v395 = vpop.trf.xlu0
  %v396 = vpop.trf.xlu0
  %v397 = vpop.trf.xlu0
  %v398 = vpop.trf.xlu0
  %v399 = vpop.trf.xlu0
  %v400 = vpop.trf.xlu0
  %v401 = vpop.trf.xlu0
  %v402 = vpop.trf.xlu0
  %403 = vxpose.xlu0.b32.start [1/16] %v162, 128
  %404 = vxpose.xlu0.b32.cont [2/16] %v165, 128
  %405 = vxpose.xlu0.b32.cont [3/16] 0.0, 128
  %406 = vxpose.xlu0.b32.cont [4/16] 0.0, 128
  %407 = vxpose.xlu0.b32.cont [5/16] 0.0, 128
  %408 = vxpose.xlu0.b32.cont [6/16] 0.0, 128
  %409 = vxpose.xlu0.b32.cont [7/16] 0.0, 128
  %410 = vxpose.xlu0.b32.cont [8/16] 0.0, 128
  %411 = vxpose.xlu0.b32.cont [9/16] 0.0, 128
  %412 = vxpose.xlu0.b32.cont [10/16] 0.0, 128
  %413 = vxpose.xlu0.b32.cont [11/16] 0.0, 128
  %414 = vxpose.xlu0.b32.cont [12/16] 0.0, 128
  %415 = vxpose.xlu0.b32.cont [13/16] 0.0, 128
  %416 = vxpose.xlu0.b32.cont [14/16] 0.0, 128
  %417 = vxpose.xlu0.b32.cont [15/16] 0.0, 128
  %418 = vxpose.xlu0.b32.end [16/16] 0.0, 128
  %v419 = vpop.trf.xlu0
  %v420 = vpop.trf.xlu0
  %v421 = vpop.trf.xlu0
  %v422 = vpop.trf.xlu0
  %v423 = vpop.trf.xlu0
  %v424 = vpop.trf.xlu0
  %v425 = vpop.trf.xlu0
  %v426 = vpop.trf.xlu0
  %v427 = vpop.trf.xlu0
  %v428 = vpop.trf.xlu0
  %v429 = vpop.trf.xlu0
  %v430 = vpop.trf.xlu0
  %v431 = vpop.trf.xlu0
  %v432 = vpop.trf.xlu0
  %v433 = vpop.trf.xlu0
  %v434 = vpop.trf.xlu0
  %435 = vxpose.xlu0.b32.start [1/16] %v168, 128
  %436 = vxpose.xlu0.b32.cont [2/16] %v171, 128
  %437 = vxpose.xlu0.b32.cont [3/16] 0.0, 128
  %438 = vxpose.xlu0.b32.cont [4/16] 0.0, 128
  %439 = vxpose.xlu0.b32.cont [5/16] 0.0, 128
  %440 = vxpose.xlu0.b32.cont [6/16] 0.0, 128
  %441 = vxpose.xlu0.b32.cont [7/16] 0.0, 128
  %442 = vxpose.xlu0.b32.cont [8/16] 0.0, 128
  %443 = vxpose.xlu0.b32.cont [9/16] 0.0, 128
  %444 = vxpose.xlu0.b32.cont [10/16] 0.0, 128
  %445 = vxpose.xlu0.b32.cont [11/16] 0.0, 128
  %446 = vxpose.xlu0.b32.cont [12/16] 0.0, 128
  %447 = vxpose.xlu0.b32.cont [13/16] 0.0, 128
  %448 = vxpose.xlu0.b32.cont [14/16] 0.0, 128
  %449 = vxpose.xlu0.b32.cont [15/16] 0.0, 128
  %450 = vxpose.xlu0.b32.end [16/16] 0.0, 128
  %v451 = vpop.trf.xlu0
  %v452 = vpop.trf.xlu0
  %v453 = vpop.trf.xlu0
  %v454 = vpop.trf.xlu0
  %v455 = vpop.trf.xlu0
  %v456 = vpop.trf.xlu0
  %v457 = vpop.trf.xlu0
  %v458 = vpop.trf.xlu0
  %v459 = vpop.trf.xlu0
  %v460 = vpop.trf.xlu0
  %v461 = vpop.trf.xlu0
  %v462 = vpop.trf.xlu0
  %v463 = vpop.trf.xlu0
  %v464 = vpop.trf.xlu0
  %v465 = vpop.trf.xlu0
  %v466 = vpop.trf.xlu0
  %467 = vxpose.xlu0.b32.start [1/16] %v174, 128
  %468 = vxpose.xlu0.b32.cont [2/16] %v177, 128
  %469 = vxpose.xlu0.b32.cont [3/16] 0.0, 128
  %470 = vxpose.xlu0.b32.cont [4/16] 0.0, 128
  %471 = vxpose.xlu0.b32.cont [5/16] 0.0, 128
  %472 = vxpose.xlu0.b32.cont [6/16] 0.0, 128
  %473 = vxpose.xlu0.b32.cont [7/16] 0.0, 128
  %474 = vxpose.xlu0.b32.cont [8/16] 0.0, 128
  %475 = vxpose.xlu0.b32.cont [9/16] 0.0, 128
  %476 = vxpose.xlu0.b32.cont [10/16] 0.0, 128
  %477 = vxpose.xlu0.b32.cont [11/16] 0.0, 128
  %478 = vxpose.xlu0.b32.cont [12/16] 0.0, 128
  %479 = vxpose.xlu0.b32.cont [13/16] 0.0, 128
  %480 = vxpose.xlu0.b32.cont [14/16] 0.0, 128
  %481 = vxpose.xlu0.b32.cont [15/16] 0.0, 128
  %482 = vxpose.xlu0.b32.end [16/16] 0.0, 128
  %v483 = vpop.trf.xlu0
  %v484 = vpop.trf.xlu0
  %v485 = vpop.trf.xlu0
  %v486 = vpop.trf.xlu0
  %v487 = vpop.trf.xlu0
  %v488 = vpop.trf.xlu0
  %v489 = vpop.trf.xlu0
  %v490 = vpop.trf.xlu0
  %v491 = vpop.trf.xlu0
  %v492 = vpop.trf.xlu0
  %v493 = vpop.trf.xlu0
  %v494 = vpop.trf.xlu0
  %v495 = vpop.trf.xlu0
  %v496 = vpop.trf.xlu0
  %v497 = vpop.trf.xlu0
  %v498 = vpop.trf.xlu0
  %v500 = vsel %vm41, %v195, 0
  %v503 = vsel %vm41, %v196, 0
  %v506 = vsel %vm41, %v227, 0
  %v509 = vsel %vm41, %v228, 0
  %v512 = vsel %vm41, %v259, 0
  %v515 = vsel %vm41, %v260, 0
  %v518 = vsel %vm41, %v291, 0
  %v521 = vsel %vm41, %v292, 0
  %v524 = vsel %vm41, %v323, 0
  %v527 = vsel %vm41, %v324, 0
  %v530 = vsel %vm41, %v355, 0
  %v533 = vsel %vm41, %v356, 0
  %v536 = vsel %vm41, %v387, 0
  %v539 = vsel %vm41, %v388, 0
  %v542 = vsel %vm41, %v419, 0
  %v545 = vsel %vm41, %v420, 0
  %v548 = vsel %vm41, %v451, 0
  %v551 = vsel %vm41, %v452, 0
  %v554 = vsel %vm41, %v483, 0
  %v557 = vsel %vm41, %v484, 0
  %559 = vmatpush.msra.mxu0 0.0
  %560 = vmatpush.msra.mxu0 0.0
  %561 = vmatpush.msra.mxu0 0.0
  %562 = vmatpush.msra.mxu0 0.0
  %563 = vmatpush.msra.mxu0 0.0
  %564 = vmatpush.msra.mxu0 0.0
  %565 = vmatpush.msra.mxu0 0.0
  %566 = vmatpush.msra.mxu0 0.0
  %567 = vmatpush.msra.mxu0 0.0
  %568 = vmatpush.msra.mxu0 0.0
  %569 = vmatpush.msra.mxu0 0.0
  %570 = vmatpush.msra.mxu0 0.0
  %571 = vmatpush.msra.mxu0 0.0
  %572 = vmatpush.msra.mxu0 0.0
  %573 = vmatpush.msra.mxu0 %v18
  %574 = vmatpush.msra.mxu0 %v17
  %575 = vmatmul.f32.gmra.mxu0 %v500
  %v576 = vpop.f32.mrf.mxu0
  %v577 = vadd.f32 0.0, %v576
  %578 = vmatmul.f32.gmra.mxu0 %v503
  %v579 = vpop.f32.mrf.mxu0
  %v580 = vadd.f32 0.0, %v579
  %581 = vmatmul.f32.gmra.mxu0 %v506
  %v582 = vpop.f32.mrf.mxu0
  %v583 = vadd.f32 0.0, %v582
  %584 = vmatmul.f32.gmra.mxu0 %v509
  %v585 = vpop.f32.mrf.mxu0
  %v586 = vadd.f32 0.0, %v585
  %587 = vmatmul.f32.gmra.mxu0 %v512
  %v588 = vpop.f32.mrf.mxu0
  %v589 = vadd.f32 0.0, %v588
  %590 = vmatmul.f32.gmra.mxu0 %v515
  %v591 = vpop.f32.mrf.mxu0
  %v592 = vadd.f32 0.0, %v591
  %593 = vmatmul.f32.gmra.mxu0 %v518
  %v594 = vpop.f32.mrf.mxu0
  %v595 = vadd.f32 0.0, %v594
  %596 = vmatmul.f32.gmra.mxu0 %v521
  %v597 = vpop.f32.mrf.mxu0
  %v598 = vadd.f32 0.0, %v597
  %599 = vmatmul.f32.gmra.mxu0 %v524
  %v600 = vpop.f32.mrf.mxu0
  %v601 = vadd.f32 0.0, %v600
  %602 = vmatmul.f32.gmra.mxu0 %v527
  %v603 = vpop.f32.mrf.mxu0
  %v604 = vadd.f32 0.0, %v603
  %605 = vmatmul.f32.gmra.mxu0 %v530
  %v606 = vpop.f32.mrf.mxu0
  %v607 = vadd.f32 0.0, %v606
  %608 = vmatmul.f32.gmra.mxu0 %v533
  %v609 = vpop.f32.mrf.mxu0
  %v610 = vadd.f32 0.0, %v609
  %611 = vmatmul.f32.gmra.mxu0 %v536
  %v612 = vpop.f32.mrf.mxu0
  %v613 = vadd.f32 0.0, %v612
  %614 = vmatmul.f32.gmra.mxu0 %v539
  %v615 = vpop.f32.mrf.mxu0
  %v616 = vadd.f32 0.0, %v615
  %617 = vmatmul.f32.gmra.mxu0 %v542
  %v618 = vpop.f32.mrf.mxu0
  %v619 = vadd.f32 0.0, %v618
  %620 = vmatmul.f32.gmra.mxu0 %v545
  %v621 = vpop.f32.mrf.mxu0
  %v622 = vadd.f32 0.0, %v621
  %623 = vmatmul.f32.gmra.mxu0 %v548
  %v624 = vpop.f32.mrf.mxu0
  %v625 = vadd.f32 0.0, %v624
  %626 = vmatmul.f32.gmra.mxu0 %v551
  %v627 = vpop.f32.mrf.mxu0
  %v628 = vadd.f32 0.0, %v627
  %629 = vmatmul.f32.gmra.mxu0 %v554
  %v630 = vpop.f32.mrf.mxu0
  %v631 = vadd.f32 0.0, %v630
  %632 = vmatmul.f32.gmra.mxu0 %v557
  %v633 = vpop.f32.mrf.mxu0
  %v634 = vadd.f32 0.0, %v633
  %635 = vdwg.mxu0
  %v636 = vmul.f32 %v577, %v577
  %v637 = vmul.f32 %v580, %v580
  %v638 = vmul.f32 %v583, %v583
  %v639 = vmul.f32 %v586, %v586
  %v640 = vmul.f32 %v589, %v589
  %v641 = vmul.f32 %v592, %v592
  %v642 = vmul.f32 %v595, %v595
  %v643 = vmul.f32 %v598, %v598
  %v644 = vmul.f32 %v577, %v589
  %v645 = vmul.f32 %v580, %v592
  %v646 = vmul.f32 %v583, %v595
  %v647 = vmul.f32 %v586, %v598
  %v648 = vsub.f32 %v601, %v636
  %v649 = vsub.f32 %v604, %v637
  %v650 = vsub.f32 %v607, %v638
  %v651 = vsub.f32 %v610, %v639
  %v652 = vsub.f32 %v613, %v640
  %v653 = vsub.f32 %v616, %v641
  %v654 = vsub.f32 %v619, %v642
  %v655 = vsub.f32 %v622, %v643
  %v656 = vsub.f32 %v625, %v644
  %v657 = vsub.f32 %v628, %v645
  %v658 = vsub.f32 %v631, %v646
  %v659 = vsub.f32 %v634, %v647
  %v660 = vmul.f32 %v644, 2.0
  %v661 = vmul.f32 %v645, 2.0
  %v662 = vmul.f32 %v646, 2.0
  %v663 = vmul.f32 %v647, 2.0
  %v664 = vadd.f32 %v660, 0.0001
  %v665 = vadd.f32 %v661, 0.0001
  %v666 = vadd.f32 %v662, 0.0001
  %v667 = vadd.f32 %v663, 0.0001
  %v668 = vmul.f32 %v656, 2.0
  %v669 = vmul.f32 %v657, 2.0
  %v670 = vmul.f32 %v658, 2.0
  %v671 = vmul.f32 %v659, 2.0
  %v672 = vadd.f32 %v668, 0.0009
  %v673 = vadd.f32 %v669, 0.0009
  %v674 = vadd.f32 %v670, 0.0009
  %v675 = vadd.f32 %v671, 0.0009
  %v676 = vmul.f32 %v664, %v672
  %v677 = vmul.f32 %v665, %v673
  %v678 = vmul.f32 %v666, %v674
  %v679 = vmul.f32 %v667, %v675
  %v680 = vadd.f32 %v636, %v640
  %v681 = vadd.f32 %v637, %v641
  %v682 = vadd.f32 %v638, %v642
  %v683 = vadd.f32 %v639, %v643
  %v684 = vadd.f32 %v680, 0.0001
  %v685 = vadd.f32 %v681, 0.0001
  %v686 = vadd.f32 %v682, 0.0001
  %v687 = vadd.f32 %v683, 0.0001
  %v688 = vadd.f32 %v648, %v652
  %v689 = vadd.f32 %v649, %v653
  %v690 = vadd.f32 %v650, %v654
  %v691 = vadd.f32 %v651, %v655
  %v692 = vadd.f32 %v688, 0.0009
  %v693 = vadd.f32 %v689, 0.0009
  %v694 = vadd.f32 %v690, 0.0009
  %v695 = vadd.f32 %v691, 0.0009
  %v696 = vmul.f32 %v684, %v692
  %v697 = vmul.f32 %v685, %v693
  %v698 = vmul.f32 %v686, %v694
  %v699 = vmul.f32 %v687, %v695
  %v700 = vrcp.pop %v696
  %v701 = vmul.f32 %v696, %v700
  %v702 = vsub.f32 1.0, %v701
  %v703 = vmul.f32 %v700, %v702
  %v704 = vadd.f32 %v700, %v703
  %vm705 = vweird.f32 %v696
  %vm706 = vweird.f32 %v700
  %vm707 = vmor %vm705, %vm706
  %v708 = vsel %vm707, %v700, %v704
  %v709 = vand.u32 2147483647, %v696
  %vm710 = vcmp.eq.f32.partialorder %v709, 8.507059e+37
  %v711 = vand.u32 %v696, 2147483648
  %v712 = vor.u32 1.1754944e-38, %v711
  %v713 = vsel %vm710, %v712, %v708
  %v714 = vrcp.pop %v697
  %v715 = vmul.f32 %v697, %v714
  %v716 = vsub.f32 1.0, %v715
  %v717 = vmul.f32 %v714, %v716
  %v718 = vadd.f32 %v714, %v717
  %vm719 = vweird.f32 %v697
  %vm720 = vweird.f32 %v714
  %vm721 = vmor %vm719, %vm720
  %v722 = vsel %vm721, %v714, %v718
  %v723 = vand.u32 2147483647, %v697
  %vm724 = vcmp.eq.f32.partialorder %v723, 8.507059e+37
  %v725 = vand.u32 %v697, 2147483648
  %v726 = vor.u32 1.1754944e-38, %v725
  %v727 = vsel %vm724, %v726, %v722
  %v728 = vrcp.pop %v698
  %v729 = vmul.f32 %v698, %v728
  %v730 = vsub.f32 1.0, %v729
  %v731 = vmul.f32 %v728, %v730
  %v732 = vadd.f32 %v728, %v731
  %vm733 = vweird.f32 %v698
  %vm734 = vweird.f32 %v728
  %vm735 = vmor %vm733, %vm734
  %v736 = vsel %vm735, %v728, %v732
  %v737 = vand.u32 2147483647, %v698
  %vm738 = vcmp.eq.f32.partialorder %v737, 8.507059e+37
  %v739 = vand.u32 %v698, 2147483648
  %v740 = vor.u32 1.1754944e-38, %v739
  %v741 = vsel %vm738, %v740, %v736
  %v742 = vrcp.pop %v699
  %v743 = vmul.f32 %v699, %v742
  %v744 = vsub.f32 1.0, %v743
  %v745 = vmul.f32 %v742, %v744
  %v746 = vadd.f32 %v742, %v745
  %vm747 = vweird.f32 %v699
  %vm748 = vweird.f32 %v742
  %vm749 = vmor %vm747, %vm748
  %v750 = vsel %vm749, %v742, %v746
  %v751 = vand.u32 2147483647, %v699
  %vm752 = vcmp.eq.f32.partialorder %v751, 8.507059e+37
  %v753 = vand.u32 %v699, 2147483648
  %v754 = vor.u32 1.1754944e-38, %v753
  %v755 = vsel %vm752, %v754, %v750
  %v756 = vmul.f32 %v676, %v713
  %v757 = vmul.f32 %v677, %v727
  %v758 = vmul.f32 %v678, %v741
  %v759 = vmul.f32 %v679, %v755
  %v760 = vsel %vm41, %v756, 0.0
  %v761 = vsel %vm41, %v757, 0.0
  %v762 = vadd.f32 %v760, %v761
  %v763 = vsel %vm41, %v758, 0.0
  %v764 = vadd.f32 %v762, %v763
  %v765 = vsel %vm41, %v759, 0.0
  %v766 = vadd.f32 %v764, %v765
  %767 = vadd.xlane.f32.xlu0 %v766
  %v768 = vpop.xlane.xlu0 %767
  %v769 = vrot.slane %v768, 4
  %v770 = vadd.f32 %v768, %v769
  %v771 = vrot.slane %v770, 2
  %v772 = vadd.f32 %v770, %v771
  %v773 = vrot.slane %v772, 1
  %v774 = vadd.f32 %v772, %v773
  %s775 = vtos %v774
  %v776 = vstv %s775
  %777 = vst [vmem:[%s4] sm:$0xff] %v776
  // Predicated region
  $region18: #{sim_loss.1} parent=0 // pred_check
    _
  $region19: #{sim_loss.1} parent=0 // pred_check_branch
    %779 = sbr.rel (0) target = $region21
  $region20: #{sim_loss.1} parent=0 // pred_region
    _
  $region21: #{sim_loss.1} parent=0 // pred_fallthru
    _
  // Predicated region
  $region22: #{sim_loss.1} parent=0 // pred_check
    _
  $region23: #{sim_loss.1} parent=0 // pred_check_branch
    %781 = sbr.rel (0) target = $region25
  $region24: #{sim_loss.1} parent=0 // pred_region
    _
  $region25: #{sim_loss.1} parent=0 // pred_fallthru
    _

</llo_original>
